<compile_context>
chip_gen: v6e
topology: v6e:2x2x1
jax: 0.10.0
libtpu: 0.0.40
codegen_flags: <defaults>
</compile_context>

<pallas_src>
import numpy as np
import jax
import jax.numpy as jnp
from jax.experimental import pallas as pl
from jax.experimental.pallas import tpu as pltpu


# ----------------------------- fixed linear operators -----------------------------

def adaptive_avg_pool_matrix(in_size: int, out_size: int) -> np.ndarray:
    """Matrix A (out, in) such that A @ v == AdaptiveAvgPool1d(v, out)."""
    A = np.zeros((out_size, in_size), dtype=np.float32)
    for i in range(out_size):
        start = (i * in_size) // out_size
        end = -((-(i + 1) * in_size) // out_size)  # ceil((i+1)*in/out)
        A[i, start:end] = 1.0 / (end - start)
    return A


def bilinear_upsample_matrix(out_size: int, in_size: int) -> np.ndarray:
    """Matrix U (out, in) for 1-D bilinear interpolation, align_corners=True."""
    U = np.zeros((out_size, in_size), dtype=np.float32)
    if in_size == 1:
        U[:, 0] = 1.0
        return U
    for o in range(out_size):
        src = o * (in_size - 1) / (out_size - 1)
        lo = min(int(np.floor(src)), in_size - 2)
        frac = src - lo
        U[o, lo] = 1.0 - frac
        U[o, lo + 1] = frac
    return U


def _pick_hw_tile(HW: int):
    """HW tile width (multiple of 128, preferring 512/256) and padded HW."""
    candidates = (512, 256, 128)
    padded = {t: HW + ((-HW) % t) for t in candidates}
    best = min(padded.values())
    for t in candidates:  # largest tile whose padding overhead stays small
        if padded[t] <= int(best * 1.08) + 1:
            return t, padded[t]
    return 128, padded[128]


# ----------------------------- pass 1: pool + conv + BN + ReLU -----------------------------

def _pool_conv_kernel(x_ref, a_ref, w_ref, sh_ref, m_ref, z_ref, pooled_acc):
    # x_ref : (C, hw_t)      f32   input tile (one batch element, one HW tile)
    # a_ref : (HW_pad, SS)   bf16  stacked adaptive-avg-pool operator (resident)
    # w_ref : (NBC, C)       bf16  stacked 1x1 conv weights with BN scale folded in
    # sh_ref: (NBC, 1)       f32   folded BN shift
    # m_ref : (NBC, SS)      f32   block mask (branch b rows see only its SS cols)
    # z_ref : (NBC, SS)      bf16  output: masked ReLU(conv(pooled)) per batch
    # pooled_acc: (C, SS)    f32   scratch accumulator, resident across HW tiles
    t = pl.program_id(1)
    hw_t = x_ref.shape[-1]

    @pl.when(t == 0)
    def _():
        pooled_acc[...] = jnp.zeros_like(pooled_acc)

    col = pl.multiple_of(t * hw_t, 128)
    # pooled_all += x_tile @ A_tile for every branch at once (bf16 MXU, f32 acc).
    pooled_acc[...] += jnp.dot(
        x_ref[...].astype(jnp.bfloat16),
        a_ref[pl.ds(col, hw_t), :],
        preferred_element_type=jnp.float32)

    @pl.when(t == pl.num_programs(1) - 1)
    def _():
        pooled = pooled_acc[...].astype(jnp.bfloat16)            # (C, SS)
        y = jnp.dot(w_ref[...], pooled,
                    preferred_element_type=jnp.float32)          # (NBC, SS)
        z = jnp.maximum(y + sh_ref[...], 0.0) * m_ref[...]       # BN shift + ReLU + mask
        z_ref[...] = z.astype(z_ref.dtype)


# ----------------------------- pass 2: upsample + pass-through + concat write -----------------------------

def _upsample_concat_kernel(x_hbm, z_ref, u_ref, o_ref, copy_sem):
    # x_hbm : (N, C, HW_pad) f32   raw HBM ref (pass-through source)
    # z_ref : (NBC, SS)      bf16  per-batch masked conv result
    # u_ref : (SS, HW_pad)   bf16  stacked bilinear-upsample operator (resident)
    # o_ref : (C+NBC, hw_t)  f32   one output tile of the concatenated result
    n = pl.program_id(0)
    t = pl.program_id(1)
    C = x_hbm.shape[1]
    hw_t = o_ref.shape[-1]
    col = pl.multiple_of(t * hw_t, 128)

    # Pass-through channels: DMA x straight from HBM into rows 0:C of the output
    # tile (copy engine, no vreg traffic); overlapped with the upsample matmul.
    cp = pltpu.make_async_copy(
        x_hbm.at[n, :, pl.ds(col, hw_t)], o_ref.at[:C], copy_sem)
    cp.start()

    up = jnp.dot(z_ref[...], u_ref[:, pl.ds(col, hw_t)],
                 preferred_element_type=jnp.float32)             # (NBC, hw_t)
    o_ref[C:, :] = up

    cp.wait()


# ----------------------------- wrapper around the two pallas_calls -----------------------------

def ppm_forward_fused(x_flat, a_all, w_stack, shift, mask, u_all, hw_tile):
    N, C, HWp = x_flat.shape
    SS = a_all.shape[1]
    NBC = w_stack.shape[0]
    c_total = C + NBC
    T = HWp // hw_tile
    vmem_cap = 48 * 1024 * 1024

    # ---- pass 1: pooled -> conv -> BN -> ReLU -> z (N, NBC, SS) bf16 ----
    z = pl.pallas_call(
        _pool_conv_kernel,
        out_shape=jax.ShapeDtypeStruct((N, NBC, SS), jnp.bfloat16),
        grid=(N, T),
        in_specs=[
            pl.BlockSpec((pl.Squeezed(), C, hw_tile), lambda n, t: (n, 0, t)),
            pl.BlockSpec((HWp, SS), lambda n, t: (0, 0),
                         pipeline_mode=pl.Buffered(1)),
            pl.BlockSpec((NBC, C), lambda n, t: (0, 0),
                         pipeline_mode=pl.Buffered(1)),
            pl.BlockSpec((NBC, 1), lambda n, t: (0, 0),
                         pipeline_mode=pl.Buffered(1)),
            pl.BlockSpec((NBC, SS), lambda n, t: (0, 0),
                         pipeline_mode=pl.Buffered(1)),
        ],
        out_specs=pl.BlockSpec((pl.Squeezed(), NBC, SS), lambda n, t: (n, 0, 0)),
        scratch_shapes=[pltpu.VMEM((C, SS), jnp.float32)],
        compiler_params=pltpu.CompilerParams(
            dimension_semantics=("parallel", "arbitrary"),
            vmem_limit_bytes=vmem_cap),
    )(x_flat, a_all, w_stack, shift, mask)

    # ---- pass 2: per-tile upsample + x pass-through, streamed output tiles ----
    out = pl.pallas_call(
        _upsample_concat_kernel,
        out_shape=jax.ShapeDtypeStruct((N, c_total, HWp), jnp.float32),
        grid=(N, T),
        in_specs=[
            pl.BlockSpec(memory_space=pl.ANY),                    # x stays in HBM
            pl.BlockSpec((pl.Squeezed(), NBC, SS), lambda n, t: (n, 0, 0)),
            pl.BlockSpec((SS, HWp), lambda n, t: (0, 0),
                         pipeline_mode=pl.Buffered(1)),
        ],
        out_specs=pl.BlockSpec((pl.Squeezed(), c_total, hw_tile),
                               lambda n, t: (n, 0, t)),
        scratch_shapes=[pltpu.SemaphoreType.DMA(())],
        compiler_params=pltpu.CompilerParams(
            dimension_semantics=("parallel", "parallel"),
            vmem_limit_bytes=vmem_cap),
    )(x_flat, z, u_all)
    return out


# ----------------------------- module wrapper -----------------------------

class PyramidPoolingModulePallas:
    def __init__(self, in_channels: int, pool_sizes, key):
        self.in_channels = in_channels
        self.pool_sizes = tuple(pool_sizes)
        nb = len(self.pool_sizes)
        assert in_channels % nb == 0
        out_ch = in_channels // nb
        self.out_ch = out_ch
        self.num_branches = nb
        eps = 1e-5

        w_rows, shift_rows = [], []
        keys = jax.random.split(key, 5 * nb)
        for i in range(nb):
            k_w, k_g, k_b, k_m, k_v = keys[5 * i:5 * i + 5]
            w = 0.1 * jax.random.normal(k_w, (out_ch, in_channels), jnp.float32)
            gamma = 1.0 + 0.1 * jax.random.normal(k_g, (out_ch,), jnp.float32)
            beta = 0.1 * jax.random.normal(k_b, (out_ch,), jnp.float32)
            mean = 0.1 * jax.random.normal(k_m, (out_ch,), jnp.float32)
            var = 0.5 + jnp.abs(jax.random.normal(k_v, (out_ch,), jnp.float32))
            inv_std = gamma / jnp.sqrt(var + eps)
            # Fold the BN scale into the conv weight (inference-mode BN).
            w_rows.append(w * inv_std[:, None])
            shift_rows.append(beta - mean * inv_std)
        self.w_stack = jnp.concatenate(w_rows, axis=0).astype(jnp.bfloat16)  # (NBC, C)
        self.shift = jnp.concatenate(shift_rows, axis=0).reshape(-1, 1)      # (NBC, 1) f32
        self._op_cache = {}   # operators cached per (H, W, HW_pad); built once

    def _operators(self, H, W, HW_pad):
        key = (H, W, HW_pad)
        if key not in self._op_cache:
            HW = H * W
            a_blocks, u_blocks = [], []
            for s in self.pool_sizes:
                A = np.kron(adaptive_avg_pool_matrix(H, s),
                            adaptive_avg_pool_matrix(W, s))      # (s*s, HW)
                U = np.kron(bilinear_upsample_matrix(H, s),
                            bilinear_upsample_matrix(W, s))      # (HW, s*s)
                a_blocks.append(A)
                u_blocks.append(U.T)
            a_all = np.concatenate(a_blocks, axis=0).T           # (HW, SS)
            u_all = np.concatenate(u_blocks, axis=0)             # (SS, HW)
            if HW_pad > HW:
                # Zero rows/cols for the padded spatial positions: padded x columns
                # then contribute nothing to pooling, and padded output columns are
                # sliced off in the wrapper.
                a_all = np.pad(a_all, ((0, HW_pad - HW), (0, 0)))
                u_all = np.pad(u_all, ((0, 0), (0, HW_pad - HW)))
            ss_sizes = [s * s for s in self.pool_sizes]
            SS = sum(ss_sizes)
            mask = np.zeros((self.num_branches * self.out_ch, SS), np.float32)
            off = 0
            for b, k in enumerate(ss_sizes):
                mask[b * self.out_ch:(b + 1) * self.out_ch, off:off + k] = 1.0
                off += k
            self._op_cache[key] = {
                "a": jnp.asarray(a_all, dtype=jnp.bfloat16),
                "u": jnp.asarray(u_all, dtype=jnp.bfloat16),
                "mask": jnp.asarray(mask, dtype=jnp.float32),
            }
        return self._op_cache[key]

    def __call__(self, x):
        N, C, H, W = x.shape
        HW = H * W
        hw_tile, HW_pad = _pick_hw_tile(HW)
        ops = self._operators(H, W, HW_pad)
        x_flat = x.reshape(N, C, HW)
        if HW_pad != HW:
            x_flat = jnp.pad(x_flat, ((0, 0), (0, 0), (0, HW_pad - HW)))
        out_flat = ppm_forward_fused(x_flat, ops["a"], self.w_stack, self.shift,
                                     ops["mask"], ops["u"], hw_tile)
        if HW_pad != HW:
            out_flat = out_flat[..., :HW]
        return out_flat.reshape(N, C + self.num_branches * self.out_ch, H, W)


# ----------------------------- pure-JAX reference (for checking) -----------------------------

def reference_forward(x, module):
    """Mirrors the fused kernel math (same bf16 operands, f32 accumulation)."""
    N, C, H, W = x.shape
    HW = H * W
    _, HW_pad = _pick_hw_tile(HW)
    ops = module._operators(H, W, HW_pad)
    x_flat = x.reshape(N, C, HW)
    if HW_pad != HW:
        x_flat = jnp.pad(x_flat, ((0, 0), (0, 0), (0, HW_pad - HW)))
    pooled = jnp.einsum("ncp,pk->nck", x_flat.astype(jnp.bfloat16), ops["a"],
                        preferred_element_type=jnp.float32)
    y = jnp.einsum("oc,nck->nok", module.w_stack, pooled.astype(jnp.bfloat16),
                   preferred_element_type=jnp.float32)
    z = (jnp.maximum(y + module.shift[None], 0.0) * ops["mask"][None]).astype(jnp.bfloat16)
    up = jnp.einsum("nok,kp->nop", z, ops["u"], preferred_element_type=jnp.float32)
    out = jnp.concatenate([x_flat, up], axis=1)[..., :HW]
    return out.reshape(N, -1, H, W)


# ----------------------------- main -----------------------------

if __name__ == "__main__":
    key = jax.random.PRNGKey(0)
    k_x, k_p = jax.random.split(key)

    # Small shapes; H=W=30 exercises both the multi-tile pooling accumulation
    # (HW=900 padded to 1024, two 512-wide tiles) and the padding/slicing path.
    N, C, H, W = 2, 8, 30, 30
    pool_sizes = (1, 2, 3, 6)

    x = jax.random.normal(k_x, (N, C, H, W), jnp.float32)
    module = PyramidPoolingModulePallas(C, pool_sizes, k_p)

    out = jax.block_until_ready(module(x))

    expected_channels = C + (C // len(pool_sizes)) * len(pool_sizes)
    assert out.shape == (N, expected_channels, H, W), out.shape

    # x channels pass through the fused output untouched (exact f32 DMA copy).
    assert jnp.array_equal(out[:, :C], x), "passthrough channels differ"

    ref = reference_forward(x, module)
    assert jnp.allclose(out, ref, atol=2e-3, rtol=2e-3), \
        float(jnp.max(jnp.abs(out - ref)))

    print("KERNEL_OK")
</pallas_src>

<mosaic_0001>
module attributes {stable_mosaic.version = 11 : i64} {
  func.func @_pool_conv_kernel(%arg0: i32, %arg1: i32, %arg2: memref<1x8x512xf32, #tpu.memory_space<vmem>>, %arg3: memref<1024x50xbf16, #tpu.memory_space<vmem>>, %arg4: memref<8x8xbf16, #tpu.memory_space<vmem>>, %arg5: memref<8x1xf32, #tpu.memory_space<vmem>>, %arg6: memref<8x50xf32, #tpu.memory_space<vmem>>, %arg7: memref<1x8x50xbf16, #tpu.memory_space<vmem>>, %arg8: memref<8x50xf32, #tpu.memory_space<vmem>>) attributes {dimension_semantics = [#tpu.dimension_semantics<parallel>, #tpu.dimension_semantics<arbitrary>], iteration_bounds = array<i64: 2, 2>, scalar_prefetch = 0 : i64, scratch_operands = 1 : i64, tpu.core_type = #tpu.core_type<tc>, window_params = [{transform_indices = @transform_0, window_bounds = array<i64: 1, 8, 512>}, {pipeline_mode = #tpu.pipeline_mode<synchronous>, transform_indices = @transform_1, window_bounds = array<i64: 1024, 50>}, {pipeline_mode = #tpu.pipeline_mode<synchronous>, transform_indices = @transform_2, window_bounds = array<i64: 8, 8>}, {pipeline_mode = #tpu.pipeline_mode<synchronous>, transform_indices = @transform_3, window_bounds = array<i64: 8, 1>}, {pipeline_mode = #tpu.pipeline_mode<synchronous>, transform_indices = @transform_4, window_bounds = array<i64: 8, 50>}, {transform_indices = @transform_5, window_bounds = array<i64: 1, 8, 50>}]} {
    %c0_i32 = arith.constant 0 : i32
    %0 = arith.cmpi eq, %arg1, %c0_i32 : i32
    %1 = arith.extui %0 : i1 to i32
    %c0_i32_0 = arith.constant 0 : i32
    %2 = arith.cmpi ne, %1, %c0_i32_0 : i32
    scf.if %2 {
      %cst_9 = arith.constant 0.000000e+00 : f32
      %17 = vector.broadcast %cst_9 : f32 to vector<8x50xf32>
      %c0_10 = arith.constant 0 : index
      %c0_11 = arith.constant 0 : index
      %18 = vector.load %arg8[%c0_10, %c0_11] : memref<8x50xf32, #tpu.memory_space<vmem>>, vector<8x50xf32>
      tpu.vector_store %arg8[%c0_10, %c0_11], %17 {strides = array<i32>} : memref<8x50xf32, #tpu.memory_space<vmem>>, vector<8x50xf32>,
    } else {
    }
    %c512_i32 = arith.constant 512 : i32
    %3 = arith.muli %arg1, %c512_i32 : i32
    %4 = tpu.assume_multiple %3, 128 : i32
    %c0 = arith.constant 0 : index
    %c0_1 = arith.constant 0 : index
    %5 = vector.load %arg8[%c0, %c0_1] : memref<8x50xf32, #tpu.memory_space<vmem>>, vector<8x50xf32>
    %c0_2 = arith.constant 0 : index
    %c0_3 = arith.constant 0 : index
    %c0_4 = arith.constant 0 : index
    %6 = vector.load %arg2[%c0_2, %c0_3, %c0_4] : memref<1x8x512xf32, #tpu.memory_space<vmem>>, vector<1x8x512xf32>
    %7 = vector.shape_cast %6 : vector<1x8x512xf32> to vector<8x512xf32>
    %8 = arith.truncf %7 : vector<8x512xf32> to vector<8x512xbf16>
    %9 = arith.index_cast %4 : i32 to index
    %c0_5 = arith.constant 0 : index
    %10 = vector.load %arg3[%9, %c0_5] : memref<1024x50xbf16, #tpu.memory_space<vmem>>, vector<512x50xbf16>
    %cst = arith.constant dense<0.000000e+00> : vector<8x50xf32>
    %11 = tpu.matmul %8, %10, %cst {dimension_numbers = #tpu.dot_dimension_numbers<[1], [0], [0], [1], [0, 0, 1, 1], [], []>} : vector<8x512xbf16>, vector<512x50xbf16>, vector<8x50xf32> -> vector<8x50xf32>
    %12 = arith.addf %5, %11 : vector<8x50xf32>
    %c0_6 = arith.constant 0 : index
    %c0_7 = arith.constant 0 : index
    %13 = vector.load %arg8[%c0_6, %c0_7] : memref<8x50xf32, #tpu.memory_space<vmem>>, vector<8x50xf32>
    tpu.vector_store %arg8[%c0_6, %c0_7], %12 {strides = array<i32>} : memref<8x50xf32, #tpu.memory_space<vmem>>, vector<8x50xf32>,
    %c1_i32 = arith.constant 1 : i32
    %14 = arith.cmpi eq, %arg1, %c1_i32 : i32
    %15 = arith.extui %14 : i1 to i32
    %c0_i32_8 = arith.constant 0 : i32
    %16 = arith.cmpi ne, %15, %c0_i32_8 : i32
    scf.if %16 {
      %c0_9 = arith.constant 0 : index
      %c0_10 = arith.constant 0 : index
      %17 = vector.load %arg8[%c0_9, %c0_10] : memref<8x50xf32, #tpu.memory_space<vmem>>, vector<8x50xf32>
      %18 = arith.truncf %17 : vector<8x50xf32> to vector<8x50xbf16>
      %c0_11 = arith.constant 0 : index
      %c0_12 = arith.constant 0 : index
      %19 = vector.load %arg4[%c0_11, %c0_12] : memref<8x8xbf16, #tpu.memory_space<vmem>>, vector<8x8xbf16>
      %cst_13 = arith.constant dense<0.000000e+00> : vector<8x50xf32>
      %20 = tpu.matmul %19, %18, %cst_13 {dimension_numbers = #tpu.dot_dimension_numbers<[1], [0], [0], [1], [0, 0, 1, 1], [], []>} : vector<8x8xbf16>, vector<8x50xbf16>, vector<8x50xf32> -> vector<8x50xf32>
      %c0_14 = arith.constant 0 : index
      %c0_15 = arith.constant 0 : index
      %21 = vector.load %arg5[%c0_14, %c0_15] : memref<8x1xf32, #tpu.memory_space<vmem>>, vector<8x1xf32>
      %22 = vector.broadcast %21 : vector<8x1xf32> to vector<8x50xf32>
      %23 = arith.addf %20, %22 : vector<8x50xf32>
      %cst_16 = arith.constant 0.000000e+00 : f32
      %24 = vector.broadcast %cst_16 : f32 to vector<8x50xf32>
      %25 = arith.maximumf %23, %24 : vector<8x50xf32>
      %c0_17 = arith.constant 0 : index
      %c0_18 = arith.constant 0 : index
      %26 = vector.load %arg6[%c0_17, %c0_18] : memref<8x50xf32, #tpu.memory_space<vmem>>, vector<8x50xf32>
      %27 = arith.mulf %25, %26 : vector<8x50xf32>
      %28 = arith.truncf %27 : vector<8x50xf32> to vector<8x50xbf16>
      %c0_19 = arith.constant 0 : index
      %c0_20 = arith.constant 0 : index
      %c0_21 = arith.constant 0 : index
      %29 = vector.load %arg7[%c0_19, %c0_20, %c0_21] : memref<1x8x50xbf16, #tpu.memory_space<vmem>>, vector<1x8x50xbf16>
      %30 = vector.shape_cast %29 : vector<1x8x50xbf16> to vector<8x50xbf16>
      %31 = vector.shape_cast %28 : vector<8x50xbf16> to vector<1x8x50xbf16>
      tpu.vector_store %arg7[%c0_19, %c0_20, %c0_21], %31 {strides = array<i32>} : memref<1x8x50xbf16, #tpu.memory_space<vmem>>, vector<1x8x50xbf16>,
    } else {
    }
    return
  }
  func.func @transform_0(%arg0: i32, %arg1: i32) -> (i32, i32, i32) {
    %c0_i32 = arith.constant 0 : i32
    %c0_i32_0 = arith.constant 0 : i32
    return %arg0, %c0_i32, %arg1 : i32, i32, i32
  }
  func.func @transform_1(%arg0: i32, %arg1: i32) -> (i32, i32) {
    %c0_i32 = arith.constant 0 : i32
    %c0_i32_0 = arith.constant 0 : i32
    %c0_i32_1 = arith.constant 0 : i32
    return %c0_i32, %c0_i32_0 : i32, i32
  }
  func.func @transform_2(%arg0: i32, %arg1: i32) -> (i32, i32) {
    %c0_i32 = arith.constant 0 : i32
    %c0_i32_0 = arith.constant 0 : i32
    %c0_i32_1 = arith.constant 0 : i32
    return %c0_i32, %c0_i32_0 : i32, i32
  }
  func.func @transform_3(%arg0: i32, %arg1: i32) -> (i32, i32) {
    %c0_i32 = arith.constant 0 : i32
    %c0_i32_0 = arith.constant 0 : i32
    %c0_i32_1 = arith.constant 0 : i32
    return %c0_i32, %c0_i32_0 : i32, i32
  }
  func.func @transform_4(%arg0: i32, %arg1: i32) -> (i32, i32) {
    %c0_i32 = arith.constant 0 : i32
    %c0_i32_0 = arith.constant 0 : i32
    %c0_i32_1 = arith.constant 0 : i32
    return %c0_i32, %c0_i32_0 : i32, i32
  }
  func.func @transform_5(%arg0: i32, %arg1: i32) -> (i32, i32, i32) {
    %c0_i32 = arith.constant 0 : i32
    %c0_i32_0 = arith.constant 0 : i32
    %c0_i32_1 = arith.constant 0 : i32
    return %arg0, %c0_i32, %c0_i32_0 : i32, i32, i32
  }
}

</mosaic_0001>

<llo_original>
// kernel: tpu_custom_call.1
$region0: #{tpu_custom_call.1}
  #allocation0 [shape = 'u32[]', space=smem, size = 0x4, offset = 0x4, fixed_abs, tag = 'smem constant byte address 0x4 - core index']
  #allocation1 [shape = 'u32[144,128]{1,0:T(1,128)}', space=vmem, size = 0x12000, scoped, tag = 'internal scratch']
  #allocation2 [shape = 'f32[8,50]{1,0:T(8,128)}', space=vmem, size = 0x1000, scoped, tag = 'scratch operand']
  %s0 = inlined_call_operand.vmem [shape: f32[2,8,1024], index: 0, kind: input, shape index: {}]
  %s1 = inlined_call_operand.vmem [shape: bf16[1024,50], index: 1, kind: input, shape index: {}]
  %s2 = inlined_call_operand.vmem [shape: bf16[8,8], index: 2, kind: input, shape index: {}]
  %s3 = inlined_call_operand.vmem [shape: f32[8,1], index: 3, kind: input, shape index: {}]
  %s4 = inlined_call_operand.vmem [shape: f32[8,50], index: 4, kind: input, shape index: {}]
  %s5 = inlined_call_operand.hbm [shape: bf16[2,8,50], index: 5, kind: output, shape index: {}]
  %s6 = sld [smem:[#allocation0]]
  $region61: #{tpu_custom_call.1} parent=0
    _
  %s8 = ssub.s32 1, %s6
  %s9 = scalar_select 0, %s8, %s6
  $region1: #{tpu_custom_call.1} parent=0
    #allocation3 [shape = 'u8[4096]{0}', space=vmem, size = 0x1000, scoped, tag = 'output window, operand 0']
    #allocation4 [shape = 's32[2]{0}', space=sflag, size = 0x8, scoped, tag = 'scoped memory for tpu_custom_call.1']
    %10 = vsyncpa [#allocation4], 0
    %s11 = scalar_lea.sflag [#allocation4], 1
    %12 = vsyncpa %s11, 0
    loop: start=0, step=1, limit=6
    $region2: #{tpu_custom_call.1} parent=1 // loop_pre_header
      _
    $region3: #{tpu_custom_call.1} parent=1 // loop_header
      %s14 = sphi 0, %s18
      %p15 = scmp.ge.s32.totalorder %s14, 6
      %s21 = sphi 0, %s33
      %s22 = sphi 0, %s29
      %s23 = sphi 0, %s21
      %s24 = sphi 0, %s22
      %s25 = sphi 0, %s23
      %s26 = sphi 0, %s24
      %s38 = sphi 0, %s40
      %s41 = sphi 0, %s38
      %s42 = sphi 0, %s41
      %s58 = sphi 0, %s42
      %s62 = sphi 0, %s62
      %s64 = sphi 0, %s62
      %s65 = sphi 0, %s64
      %s79 = sphi 0, %s65
      %s83 = sphi 0, %s83
      %s85 = sphi 0, %s83
      %s86 = sphi 0, %s85
      %s100 = sphi 0, %s86
      %s104 = sphi 0, %s104
      %s106 = sphi 0, %s104
      %s107 = sphi 0, %s106
      %s121 = sphi 0, %s107
      %s125 = sphi 0, %s125
      %s127 = sphi 0, %s125
      %s128 = sphi 0, %s127
      %s142 = sphi 0, %s128
      %s148 = sphi 0, %s150
      %s151 = sphi 0, %s148
      %s152 = sphi 0, %s151
      %s168 = sphi 0, %s152
    $region4: #{tpu_custom_call.1} parent=1 // loop_header_branch
      %17 = sbr.rel (%p15) target = $region8
    $region5: #{tpu_custom_call.1} parent=1 // loop_body
      %s19 = ssub.s32 %s14, 1
      %s20 = ssub.s32 %s14, 2
      %s27 = sadd.s32 1, %s22
      %p28 = scmp.ge.s32.totalorder %s27, 2
      %s29 = scalar_select %p28, 0, %s27
      %s30 = sadd.s32 1, %s21
      %s31 = scalar_select %p28, %s30, %s21
      %p32 = scmp.ge.s32.totalorder %s31, 2
      %s33 = scalar_select %p32, 0, %s31
      %s34 = ssub.s32 %s21, %s33
      %s35 = ssub.s32 %s22, %s29
      %s36 = sor.u32 %s34, %s35
      %p37 = scmp.eq.s32.totalorder %s36, 0
      %s39 = sadd.s32 %s38, 1
      %s40 = scalar_select %p37, %s38, %s39
      %p43 = pneg %p37
      %p44 = scmp.eq.s32.totalorder %s14, 3
      %p45 = por %p43, %p44
      %p46 = scmp.ne.s32.totalorder %s38, %s41
      %p47 = scmp.eq.s32.totalorder %s14, 0
      %p48 = por %p46, %p47
      %p49 = scmp.ne.s32.totalorder %s38, %s41
      %p50 = scmp.eq.s32.totalorder %s19, 3
      %p51 = por %p49, %p50
      %p52 = scmp.ne.s32.totalorder %s41, %s42
      %p53 = scmp.eq.s32.totalorder %s19, 0
      %p54 = por %p52, %p53
      %p55 = scmp.ne.s32.totalorder %s41, %s42
      %p56 = scmp.eq.s32.totalorder %s20, 3
      %p57 = por %p55, %p56
      %p59 = scmp.ne.s32.totalorder %s42, %s58
      %p60 = scmp.eq.s32.totalorder %s20, 0
      %p61 = por %p59, %p60
      %s63 = sadd.s32 %s62, 1
      %p66 = scmp.eq.s32.totalorder %s14, 3
      %p67 = scmp.ne.s32.totalorder %s62, %s64
      %p68 = scmp.eq.s32.totalorder %s14, 0
      %p69 = por %p67, %p68
      %p70 = scmp.ne.s32.totalorder %s62, %s64
      %p71 = scmp.eq.s32.totalorder %s19, 3
      %p72 = por %p70, %p71
      %p73 = scmp.ne.s32.totalorder %s64, %s65
      %p74 = scmp.eq.s32.totalorder %s19, 0
      %p75 = por %p73, %p74
      %p76 = scmp.ne.s32.totalorder %s64, %s65
      %p77 = scmp.eq.s32.totalorder %s20, 3
      %p78 = por %p76, %p77
      %p80 = scmp.ne.s32.totalorder %s65, %s79
      %p81 = scmp.eq.s32.totalorder %s20, 0
      %p82 = por %p80, %p81
      %s84 = sadd.s32 %s83, 1
      %p87 = scmp.eq.s32.totalorder %s14, 3
      %p88 = scmp.ne.s32.totalorder %s83, %s85
      %p89 = scmp.eq.s32.totalorder %s14, 0
      %p90 = por %p88, %p89
      %p91 = scmp.ne.s32.totalorder %s83, %s85
      %p92 = scmp.eq.s32.totalorder %s19, 3
      %p93 = por %p91, %p92
      %p94 = scmp.ne.s32.totalorder %s85, %s86
      %p95 = scmp.eq.s32.totalorder %s19, 0
      %p96 = por %p94, %p95
      %p97 = scmp.ne.s32.totalorder %s85, %s86
      %p98 = scmp.eq.s32.totalorder %s20, 3
      %p99 = por %p97, %p98
      %p101 = scmp.ne.s32.totalorder %s86, %s100
      %p102 = scmp.eq.s32.totalorder %s20, 0
      %p103 = por %p101, %p102
      %s105 = sadd.s32 %s104, 1
      %p108 = scmp.eq.s32.totalorder %s14, 3
      %p109 = scmp.ne.s32.totalorder %s104, %s106
      %p110 = scmp.eq.s32.totalorder %s14, 0
      %p111 = por %p109, %p110
      %p112 = scmp.ne.s32.totalorder %s104, %s106
      %p113 = scmp.eq.s32.totalorder %s19, 3
      %p114 = por %p112, %p113
      %p115 = scmp.ne.s32.totalorder %s106, %s107
      %p116 = scmp.eq.s32.totalorder %s19, 0
      %p117 = por %p115, %p116
      %p118 = scmp.ne.s32.totalorder %s106, %s107
      %p119 = scmp.eq.s32.totalorder %s20, 3
      %p120 = por %p118, %p119
      %p122 = scmp.ne.s32.totalorder %s107, %s121
      %p123 = scmp.eq.s32.totalorder %s20, 0
      %p124 = por %p122, %p123
      %s126 = sadd.s32 %s125, 1
      %p129 = scmp.eq.s32.totalorder %s14, 3
      %p130 = scmp.ne.s32.totalorder %s125, %s127
      %p131 = scmp.eq.s32.totalorder %s14, 0
      %p132 = por %p130, %p131
      %p133 = scmp.ne.s32.totalorder %s125, %s127
      %p134 = scmp.eq.s32.totalorder %s19, 3
      %p135 = por %p133, %p134
      %p136 = scmp.ne.s32.totalorder %s127, %s128
      %p137 = scmp.eq.s32.totalorder %s19, 0
      %p138 = por %p136, %p137
      %p139 = scmp.ne.s32.totalorder %s127, %s128
      %p140 = scmp.eq.s32.totalorder %s20, 3
      %p141 = por %p139, %p140
      %p143 = scmp.ne.s32.totalorder %s128, %s142
      %p144 = scmp.eq.s32.totalorder %s20, 0
      %p145 = por %p143, %p144
      %s146 = ssub.s32 %s21, %s33
      %p147 = scmp.eq.s32.totalorder %s146, 0
      %s149 = sadd.s32 %s148, 1
      %s150 = scalar_select %p147, %s148, %s149
      %p153 = pneg %p147
      %p154 = scmp.eq.s32.totalorder %s14, 3
      %p155 = por %p153, %p154
      %p156 = scmp.ne.s32.totalorder %s148, %s151
      %p157 = scmp.eq.s32.totalorder %s14, 0
      %p158 = por %p156, %p157
      %p159 = scmp.ne.s32.totalorder %s148, %s151
      %p160 = scmp.eq.s32.totalorder %s19, 3
      %p161 = por %p159, %p160
      %p162 = scmp.ne.s32.totalorder %s151, %s152
      %p163 = scmp.eq.s32.totalorder %s19, 0
      %p164 = por %p162, %p163
      %p165 = scmp.ne.s32.totalorder %s151, %s152
      %p166 = scmp.eq.s32.totalorder %s20, 3
      %p167 = por %p165, %p166
      %p169 = scmp.ne.s32.totalorder %s152, %s168
      %p170 = scmp.eq.s32.totalorder %s20, 0
      %p171 = por %p169, %p170
      %p172 = scmp.le.s32.totalorder 1, %s14
      %p173 = scmp.lt.s32.totalorder %s14, 5
      %p174 = pnand %p172, %p173
      %p175 = pneg %p174
      // Predicated region
      $region9: #{tpu_custom_call.1} parent=5 // pred_check
        _
      $region10: #{tpu_custom_call.1} parent=5 // pred_check_branch
        %177 = sbr.rel (%p174) target = $region12
      $region11: #{tpu_custom_call.1} parent=5 // pred_region
        %s178 = ssub.s32 %s14, 1
        // Predicated region
        $region13: #{tpu_custom_call.1} parent=11 // pred_check
          %p179 = pneg %p75
        $region14: #{tpu_custom_call.1} parent=11 // pred_check_branch
          %181 = sbr.rel (%p179) target = $region16
        $region15: #{tpu_custom_call.1} parent=11 // pred_region
          _
        $region16: #{tpu_custom_call.1} parent=11 // pred_fallthru
          _
        // Predicated region
        $region17: #{tpu_custom_call.1} parent=11 // pred_check
          %p182 = pneg %p96
        $region18: #{tpu_custom_call.1} parent=11 // pred_check_branch
          %184 = sbr.rel (%p182) target = $region20
        $region19: #{tpu_custom_call.1} parent=11 // pred_region
          _
        $region20: #{tpu_custom_call.1} parent=11 // pred_fallthru
          _
        // Predicated region
        $region21: #{tpu_custom_call.1} parent=11 // pred_check
          %p185 = pneg %p117
        $region22: #{tpu_custom_call.1} parent=11 // pred_check_branch
          %187 = sbr.rel (%p185) target = $region24
        $region23: #{tpu_custom_call.1} parent=11 // pred_region
          _
        $region24: #{tpu_custom_call.1} parent=11 // pred_fallthru
          _
        // Predicated region
        $region25: #{tpu_custom_call.1} parent=11 // pred_check
          %p188 = pneg %p138
        $region26: #{tpu_custom_call.1} parent=11 // pred_check_branch
          %190 = sbr.rel (%p188) target = $region28
        $region27: #{tpu_custom_call.1} parent=11 // pred_region
          _
        $region28: #{tpu_custom_call.1} parent=11 // pred_fallthru
          _
      $region12: #{tpu_custom_call.1} parent=5 // pred_fallthru
        _
      %p191 = scmp.lt.s32.totalorder %s14, 4
      // Predicated region
      $region29: #{tpu_custom_call.1} parent=5 // pred_check
        %p192 = pneg %p191
      $region30: #{tpu_custom_call.1} parent=5 // pred_check_branch
        %194 = sbr.rel (%p192) target = $region32
      $region31: #{tpu_custom_call.1} parent=5 // pred_region
        // Predicated region
        $region33: #{tpu_custom_call.1} parent=31 // pred_check
          %p195 = pneg %p48
        $region34: #{tpu_custom_call.1} parent=31 // pred_check_branch
          %197 = sbr.rel (%p195) target = $region36
        $region35: #{tpu_custom_call.1} parent=31 // pred_region
          %s198 = smul.u32 4, %s22
          %p199 = scmp.lt.s32.totalorder %s21, 1
          %s200 = scalar_select %p199, %s21, 1
          %p201 = scmp.lt.s32.totalorder %s198, 7
          %s202 = scalar_select %p201, %s198, 7
          %s203 = smul.addr %s200, 8
          %s204 = sadd.s32 %s202, %s203
          %s205 = smul.addr %s204, 8
          %s206 = scalar_lea.vmem %s0, %s205
          %s207 = smul.u32 4, %s22
        $region36: #{tpu_custom_call.1} parent=31 // pred_fallthru
          _
      $region32: #{tpu_custom_call.1} parent=5 // pred_fallthru
        _
      %p208 = scmp.le.s32.totalorder 1, %s14
      %p209 = scmp.lt.s32.totalorder %s14, 5
      %p210 = pnand %p208, %p209
      %p211 = pneg %p210
      // Predicated region
      $region37: #{tpu_custom_call.1} parent=5 // pred_check
        _
      $region38: #{tpu_custom_call.1} parent=5 // pred_check_branch
        %213 = sbr.rel (%p210) target = $region40
      $region39: #{tpu_custom_call.1} parent=5 // pred_region
        %s214 = ssub.s32 %s14, 1
        %s215 = smul.u32 4, %s24
        %p216 = scmp.lt.s32.totalorder %s23, 1
        %s217 = scalar_select %p216, %s23, 1
        %p218 = scmp.lt.s32.totalorder %s215, 7
        %s219 = scalar_select %p218, %s215, 7
        %s220 = smul.addr %s217, 8
        %s221 = sadd.s32 %s219, %s220
        %s222 = smul.addr %s221, 8
        %s223 = scalar_lea.vmem %s0, %s222
        %p224 = pneg %p54
        %p225 = pneg %p51
        %p226 = pneg %p75
        %p227 = pneg %p72
        %p228 = pneg %p96
        %p229 = pneg %p93
        %p230 = pneg %p117
        %p231 = pneg %p114
        %p232 = pneg %p138
        %p233 = pneg %p135
        %p234 = pneg %p164
        %p235 = pneg %p161
        %s236 = sand.u32 %s151, 1
        %s237 = scalar_lea.sflag [#allocation4], %s236
        %s238 = sand.u32 %s151, 1
        %s239 = smul.addr %s238, 4
        %s240 = scalar_lea.vmem [#allocation3], %s239
        %s241 = smul.u32 4, %s24
        %p242 = scmp.lt.s32.totalorder %s23, 1
        %s243 = scalar_select %p242, %s23, 1
        %p244 = scmp.lt.s32.totalorder %s241, 7
        %s245 = scalar_select %p244, %s241, 7
        %s246 = smul.addr %s243, 8
        %s247 = sadd.s32 %s245, %s246
        %s248 = smul.addr %s247, 8
        %s249 = scalar_lea.vmem %s0, %s248
        %s250 = smul.u32 4, %s24
        %p252 = scmp.eq.s32.totalorder %s24, 0
        // Predicated region
        $region41: #{tpu_custom_call.1} parent=39 // pred_check
          %p253 = pneg %p252
        $region42: #{tpu_custom_call.1} parent=39 // pred_check_branch
          %255 = sbr.rel (%p253) target = $region44
        $region43: #{tpu_custom_call.1} parent=39 // pred_region
          %vm256 = vcmask 408576
          %257 = vst.msk [vmem:[#allocation2] sm:$0xff] %vm256, 0.0
        $region44: #{tpu_custom_call.1} parent=39 // pred_fallthru
          _
        %s258 = smul.u32 %s24, 512
        %v259 = vld [vmem:[#allocation2] sm:$0xff]
        %v260 = vld [vmem:[%s249] sm:$0xff]
        %v261 = vld [vmem:[%s249 + $0x8] sm:$0xff]
        %v262 = vld [vmem:[%s249 + $0x10] sm:$0xff]
        %v263 = vld [vmem:[%s249 + $0x18] sm:$0xff]
        %v264 = vpack.c.bf16 %v260, %v260
        %v265 = vpack.c.bf16 %v261, %v261
        %v266 = vpack.c.bf16 %v262, %v262
        %v267 = vpack.c.bf16 %v263, %v263
        %s268 = sshra.s32 %s258, 3
        %s269 = sand.u32 %s258, 7
        %s270 = smul.addr %s268, 4
        %s271 = scalar_lea.vmem %s1, %s270
        %v272 = vld [vmem:[%s271] sm:$0xf]
        %v273 = vld [vmem:[%s271 + $0x4] sm:$0xf]
        %v274 = vld [vmem:[%s271 + $0x8] sm:$0xf]
        %v275 = vld [vmem:[%s271 + $0xc] sm:$0xf]
        %v276 = vld [vmem:[%s271 + $0x10] sm:$0xf]
        %v277 = vld [vmem:[%s271 + $0x14] sm:$0xf]
        %v278 = vld [vmem:[%s271 + $0x18] sm:$0xf]
        %v279 = vld [vmem:[%s271 + $0x1c] sm:$0xf]
        %v280 = vld [vmem:[%s271 + $0x20] sm:$0xf]
        %v281 = vld [vmem:[%s271 + $0x24] sm:$0xf]
        %v282 = vld [vmem:[%s271 + $0x28] sm:$0xf]
        %v283 = vld [vmem:[%s271 + $0x2c] sm:$0xf]
        %v284 = vld [vmem:[%s271 + $0x30] sm:$0xf]
        %v285 = vld [vmem:[%s271 + $0x34] sm:$0xf]
        %v286 = vld [vmem:[%s271 + $0x38] sm:$0xf]
        %v287 = vld [vmem:[%s271 + $0x3c] sm:$0xf]
        %v288 = vld [vmem:[%s271 + $0x40] sm:$0xf]
        %v289 = vld [vmem:[%s271 + $0x44] sm:$0xf]
        %v290 = vld [vmem:[%s271 + $0x48] sm:$0xf]
        %v291 = vld [vmem:[%s271 + $0x4c] sm:$0xf]
        %v292 = vld [vmem:[%s271 + $0x50] sm:$0xf]
        %v293 = vld [vmem:[%s271 + $0x54] sm:$0xf]
        %v294 = vld [vmem:[%s271 + $0x58] sm:$0xf]
        %v295 = vld [vmem:[%s271 + $0x5c] sm:$0xf]
        %v296 = vld [vmem:[%s271 + $0x60] sm:$0xf]
        %v297 = vld [vmem:[%s271 + $0x64] sm:$0xf]
        %v298 = vld [vmem:[%s271 + $0x68] sm:$0xf]
        %v299 = vld [vmem:[%s271 + $0x6c] sm:$0xf]
        %v300 = vld [vmem:[%s271 + $0x70] sm:$0xf]
        %v301 = vld [vmem:[%s271 + $0x74] sm:$0xf]
        %v302 = vld [vmem:[%s271 + $0x78] sm:$0xf]
        %v303 = vld [vmem:[%s271 + $0x7c] sm:$0xf]
        %v304 = vld [vmem:[%s271 + $0x80] sm:$0xf]
        %v305 = vld [vmem:[%s271 + $0x84] sm:$0xf]
        %v306 = vld [vmem:[%s271 + $0x88] sm:$0xf]
        %v307 = vld [vmem:[%s271 + $0x8c] sm:$0xf]
        %v308 = vld [vmem:[%s271 + $0x90] sm:$0xf]
        %v309 = vld [vmem:[%s271 + $0x94] sm:$0xf]
        %v310 = vld [vmem:[%s271 + $0x98] sm:$0xf]
        %v311 = vld [vmem:[%s271 + $0x9c] sm:$0xf]
        %v312 = vld [vmem:[%s271 + $0xa0] sm:$0xf]
        %v313 = vld [vmem:[%s271 + $0xa4] sm:$0xf]
        %v314 = vld [vmem:[%s271 + $0xa8] sm:$0xf]
        %v315 = vld [vmem:[%s271 + $0xac] sm:$0xf]
        %v316 = vld [vmem:[%s271 + $0xb0] sm:$0xf]
        %v317 = vld [vmem:[%s271 + $0xb4] sm:$0xf]
        %v318 = vld [vmem:[%s271 + $0xb8] sm:$0xf]
        %v319 = vld [vmem:[%s271 + $0xbc] sm:$0xf]
        %v320 = vld [vmem:[%s271 + $0xc0] sm:$0xf]
        %v321 = vld [vmem:[%s271 + $0xc4] sm:$0xf]
        %v322 = vld [vmem:[%s271 + $0xc8] sm:$0xf]
        %v323 = vld [vmem:[%s271 + $0xcc] sm:$0xf]
        %v324 = vld [vmem:[%s271 + $0xd0] sm:$0xf]
        %v325 = vld [vmem:[%s271 + $0xd4] sm:$0xf]
        %v326 = vld [vmem:[%s271 + $0xd8] sm:$0xf]
        %v327 = vld [vmem:[%s271 + $0xdc] sm:$0xf]
        %v328 = vld [vmem:[%s271 + $0xe0] sm:$0xf]
        %v329 = vld [vmem:[%s271 + $0xe4] sm:$0xf]
        %v330 = vld [vmem:[%s271 + $0xe8] sm:$0xf]
        %v331 = vld [vmem:[%s271 + $0xec] sm:$0xf]
        %v332 = vld [vmem:[%s271 + $0xf0] sm:$0xf]
        %v333 = vld [vmem:[%s271 + $0xf4] sm:$0xf]
        %v334 = vld [vmem:[%s271 + $0xf8] sm:$0xf]
        %v335 = vld [vmem:[%s271 + $0xfc] sm:$0xf]
        %v400 = vunpack.c.l.b16 %v272
        %v401 = vunpack.c.l.b16 %v273
        %v402 = vunpack.c.l.b16 %v274
        %v403 = vunpack.c.l.b16 %v275
        %v404 = vunpack.c.l.b16 %v276
        %v405 = vunpack.c.l.b16 %v277
        %v406 = vunpack.c.l.b16 %v278
        %v407 = vunpack.c.l.b16 %v279
        %v408 = vunpack.c.l.b16 %v280
        %v409 = vunpack.c.l.b16 %v281
        %v410 = vunpack.c.l.b16 %v282
        %v411 = vunpack.c.l.b16 %v283
        %v412 = vunpack.c.l.b16 %v284
        %v413 = vunpack.c.l.b16 %v285
        %v414 = vunpack.c.l.b16 %v286
        %v415 = vunpack.c.l.b16 %v287
        %v416 = vunpack.c.l.b16 %v288
        %v417 = vunpack.c.l.b16 %v289
        %v418 = vunpack.c.l.b16 %v290
        %v419 = vunpack.c.l.b16 %v291
        %v420 = vunpack.c.l.b16 %v292
        %v421 = vunpack.c.l.b16 %v293
        %v422 = vunpack.c.l.b16 %v294
        %v423 = vunpack.c.l.b16 %v295
        %v424 = vunpack.c.l.b16 %v296
        %v425 = vunpack.c.l.b16 %v297
        %v426 = vunpack.c.l.b16 %v298
        %v427 = vunpack.c.l.b16 %v299
        %v428 = vunpack.c.l.b16 %v300
        %v429 = vunpack.c.l.b16 %v301
        %v430 = vunpack.c.l.b16 %v302
        %v431 = vunpack.c.l.b16 %v303
        %v432 = vunpack.c.l.b16 %v304
        %v433 = vunpack.c.l.b16 %v305
        %v434 = vunpack.c.l.b16 %v306
        %v435 = vunpack.c.l.b16 %v307
        %v436 = vunpack.c.l.b16 %v308
        %v437 = vunpack.c.l.b16 %v309
        %v438 = vunpack.c.l.b16 %v310
        %v439 = vunpack.c.l.b16 %v311
        %v440 = vunpack.c.l.b16 %v312
        %v441 = vunpack.c.l.b16 %v313
        %v442 = vunpack.c.l.b16 %v314
        %v443 = vunpack.c.l.b16 %v315
        %v444 = vunpack.c.l.b16 %v316
        %v445 = vunpack.c.l.b16 %v317
        %v446 = vunpack.c.l.b16 %v318
        %v447 = vunpack.c.l.b16 %v319
        %v448 = vunpack.c.l.b16 %v320
        %v449 = vunpack.c.l.b16 %v321
        %v450 = vunpack.c.l.b16 %v322
        %v451 = vunpack.c.l.b16 %v323
        %v452 = vunpack.c.l.b16 %v324
        %v453 = vunpack.c.l.b16 %v325
        %v454 = vunpack.c.l.b16 %v326
        %v455 = vunpack.c.l.b16 %v327
        %v456 = vunpack.c.l.b16 %v328
        %v457 = vunpack.c.l.b16 %v329
        %v458 = vunpack.c.l.b16 %v330
        %v459 = vunpack.c.l.b16 %v331
        %v460 = vunpack.c.l.b16 %v332
        %v461 = vunpack.c.l.b16 %v333
        %v462 = vunpack.c.l.b16 %v334
        %v463 = vunpack.c.l.b16 %v335
        %v464 = vpack.c.b16 %v401, %v400
        %v465 = vpack.c.b16 %v403, %v402
        %v466 = vpack.c.b16 %v405, %v404
        %v467 = vpack.c.b16 %v407, %v406
        %v468 = vpack.c.b16 %v409, %v408
        %v469 = vpack.c.b16 %v411, %v410
        %v470 = vpack.c.b16 %v413, %v412
        %v471 = vpack.c.b16 %v415, %v414
        %v472 = vpack.c.b16 %v417, %v416
        %v473 = vpack.c.b16 %v419, %v418
        %v474 = vpack.c.b16 %v421, %v420
        %v475 = vpack.c.b16 %v423, %v422
        %v476 = vpack.c.b16 %v425, %v424
        %v477 = vpack.c.b16 %v427, %v426
        %v478 = vpack.c.b16 %v429, %v428
        %v479 = vpack.c.b16 %v431, %v430
        %v480 = vpack.c.b16 %v433, %v432
        %v481 = vpack.c.b16 %v435, %v434
        %v482 = vpack.c.b16 %v437, %v436
        %v483 = vpack.c.b16 %v439, %v438
        %v484 = vpack.c.b16 %v441, %v440
        %v485 = vpack.c.b16 %v443, %v442
        %v486 = vpack.c.b16 %v445, %v444
        %v487 = vpack.c.b16 %v447, %v446
        %v488 = vpack.c.b16 %v449, %v448
        %v489 = vpack.c.b16 %v451, %v450
        %v490 = vpack.c.b16 %v453, %v452
        %v491 = vpack.c.b16 %v455, %v454
        %v492 = vpack.c.b16 %v457, %v456
        %v493 = vpack.c.b16 %v459, %v458
        %v494 = vpack.c.b16 %v461, %v460
        %v495 = vpack.c.b16 %v463, %v462
        %528 = vmatprep.subr.bf16.mxu0 0
        %529 = vmatpush1.bf16.msra.mxu0 %v471
        %530 = vmatprep.subr.bf16.mxu0 0
        %531 = vmatpush1.bf16.msra.mxu0 %v470
        %532 = vmatprep.subr.bf16.mxu0 0
        %533 = vmatpush1.bf16.msra.mxu0 %v469
        %534 = vmatprep.subr.bf16.mxu0 0
        %535 = vmatpush1.bf16.msra.mxu0 %v468
        %536 = vmatprep.subr.bf16.mxu0 0
        %537 = vmatpush1.bf16.msra.mxu0 %v467
        %538 = vmatprep.subr.bf16.mxu0 0
        %539 = vmatpush1.bf16.msra.mxu0 %v466
        %540 = vmatprep.subr.bf16.mxu0 0
        %541 = vmatpush1.bf16.msra.mxu0 %v465
        %542 = vmatprep.subr.bf16.mxu0 0
        %543 = vmatpush1.bf16.msra.mxu0 %v464
        %544 = vmatprep.subr.bf16.mxu0 0
        %545 = vmatpush2.bf16.msra.mxu0 %v479
        %546 = vmatprep.subr.bf16.mxu0 0
        %547 = vmatpush2.bf16.msra.mxu0 %v478
        %548 = vmatprep.subr.bf16.mxu0 0
        %549 = vmatpush2.bf16.msra.mxu0 %v477
        %550 = vmatprep.subr.bf16.mxu0 0
        %551 = vmatpush2.bf16.msra.mxu0 %v476
        %552 = vmatprep.subr.bf16.mxu0 0
        %553 = vmatpush2.bf16.msra.mxu0 %v475
        %554 = vmatprep.subr.bf16.mxu0 0
        %555 = vmatpush2.bf16.msra.mxu0 %v474
        %556 = vmatprep.subr.bf16.mxu0 0
        %557 = vmatpush2.bf16.msra.mxu0 %v473
        %558 = vmatprep.subr.bf16.mxu0 0
        %559 = vmatpush2.bf16.msra.mxu0 %v472
        %560 = vmatprep.mubr.bf16.mxu0 %v265
        %561 = vmatmul.mubr.bf16.gmra.mxu0 %v264
        %v562 = vpop.f32.mrf.mxu0
        %v563 = vadd.f32 0.0, %v562
        %v564 = vpop.f32.mrf.mxu0
        %v565 = vpop.f32.mrf.mxu0
        %v566 = vpop.f32.mrf.mxu0
        %567 = vdwg.mxu0
        %568 = vmatprep.subr.bf16.mxu0 0
        %569 = vmatpush1.bf16.msra.mxu0 %v487
        %570 = vmatprep.subr.bf16.mxu0 0
        %571 = vmatpush1.bf16.msra.mxu0 %v486
        %572 = vmatprep.subr.bf16.mxu0 0
        %573 = vmatpush1.bf16.msra.mxu0 %v485
        %574 = vmatprep.subr.bf16.mxu0 0
        %575 = vmatpush1.bf16.msra.mxu0 %v484
        %576 = vmatprep.subr.bf16.mxu0 0
        %577 = vmatpush1.bf16.msra.mxu0 %v483
        %578 = vmatprep.subr.bf16.mxu0 0
        %579 = vmatpush1.bf16.msra.mxu0 %v482
        %580 = vmatprep.subr.bf16.mxu0 0
        %581 = vmatpush1.bf16.msra.mxu0 %v481
        %582 = vmatprep.subr.bf16.mxu0 0
        %583 = vmatpush1.bf16.msra.mxu0 %v480
        %584 = vmatprep.subr.bf16.mxu0 0
        %585 = vmatpush2.bf16.msra.mxu0 %v495
        %586 = vmatprep.subr.bf16.mxu0 0
        %587 = vmatpush2.bf16.msra.mxu0 %v494
        %588 = vmatprep.subr.bf16.mxu0 0
        %589 = vmatpush2.bf16.msra.mxu0 %v493
        %590 = vmatprep.subr.bf16.mxu0 0
        %591 = vmatpush2.bf16.msra.mxu0 %v492
        %592 = vmatprep.subr.bf16.mxu0 0
        %593 = vmatpush2.bf16.msra.mxu0 %v491
        %594 = vmatprep.subr.bf16.mxu0 0
        %595 = vmatpush2.bf16.msra.mxu0 %v490
        %596 = vmatprep.subr.bf16.mxu0 0
        %597 = vmatpush2.bf16.msra.mxu0 %v489
        %598 = vmatprep.subr.bf16.mxu0 0
        %599 = vmatpush2.bf16.msra.mxu0 %v488
        %600 = vmatprep.mubr.bf16.mxu0 %v267
        %601 = vmatmul.mubr.bf16.gmra.mxu0 %v266
        %v602 = vpop.f32.mrf.mxu0
        %v603 = vadd.f32 %v563, %v602
        %v604 = vpop.f32.mrf.mxu0
        %v605 = vpop.f32.mrf.mxu0
        %v606 = vpop.f32.mrf.mxu0
        %607 = vdwg.mxu0
        %v608 = vadd.f32 %v259, %v603
        %vm609 = vcmask 408576
        %610 = vst.msk [vmem:[#allocation2] sm:$0xff] %vm609, %v608
        %p611 = scmp.eq.s32.totalorder %s24, 1
        // Predicated region
        $region45: #{tpu_custom_call.1} parent=39 // pred_check
          %p612 = pneg %p611
        $region46: #{tpu_custom_call.1} parent=39 // pred_check_branch
          %614 = sbr.rel (%p612) target = $region48
        $region47: #{tpu_custom_call.1} parent=39 // pred_region
          %v615 = vld [vmem:[#allocation2] sm:$0xff]
          %v616 = vpack.c.bf16 %v615, %v615
          %v617 = vld [vmem:[%s2] sm:$0xf]
          %v618 = vld [vmem:[%s3] sm:$0xff]
          %620 = vset.pattern.permute.xlu0 0
          %621 = vperm.xlu0 %620, %v618
          %v622 = vpop.permute.xlu0 %621
          %vm624 = vcmask 64512
          %v626 = vsel %vm624, %v617, 0
          %vm628 = vcmask 1043456
          %v630 = vsel %vm628, %v616, 0
          %632 = vmatprep.subr.bf16.mxu0 0
          %633 = vmatpush1.bf16.msra.mxu0 0
          %634 = vmatprep.subr.bf16.mxu0 0
          %635 = vmatpush1.bf16.msra.mxu0 0
          %636 = vmatprep.subr.bf16.mxu0 0
          %637 = vmatpush1.bf16.msra.mxu0 0
          %638 = vmatprep.subr.bf16.mxu0 0
          %639 = vmatpush1.bf16.msra.mxu0 0
          %640 = vmatprep.subr.bf16.mxu0 0
          %641 = vmatpush1.bf16.msra.mxu0 0
          %642 = vmatprep.subr.bf16.mxu0 0
          %643 = vmatpush1.bf16.msra.mxu0 0
          %644 = vmatprep.subr.bf16.mxu0 0
          %645 = vmatpush1.bf16.msra.mxu0 0
          %646 = vmatprep.subr.bf16.mxu0 0
          %647 = vmatpush1.bf16.msra.mxu0 %v630
          %648 = vmatprep.subr.bf16.mxu0 0
          %649 = vmatpush2.bf16.msra.mxu0 0
          %650 = vmatprep.subr.bf16.mxu0 0
          %651 = vmatpush2.bf16.msra.mxu0 0
          %652 = vmatprep.subr.bf16.mxu0 0
          %653 = vmatpush2.bf16.msra.mxu0 0
          %654 = vmatprep.subr.bf16.mxu0 0
          %655 = vmatpush2.bf16.msra.mxu0 0
          %656 = vmatprep.subr.bf16.mxu0 0
          %657 = vmatpush2.bf16.msra.mxu0 0
          %658 = vmatprep.subr.bf16.mxu0 0
          %659 = vmatpush2.bf16.msra.mxu0 0
          %660 = vmatprep.subr.bf16.mxu0 0
          %661 = vmatpush2.bf16.msra.mxu0 0
          %662 = vmatprep.subr.bf16.mxu0 0
          %663 = vmatpush2.bf16.msra.mxu0 0
          %664 = vmatprep.mubr.bf16.mxu0 0
          %665 = vmatmul.mubr.bf16.gmra.mxu0 %v626
          %v666 = vpop.f32.mrf.mxu0
          %v667 = vadd.f32 %v622, %v666
          %v668 = vpop.f32.mrf.mxu0
          %v669 = vpop.f32.mrf.mxu0
          %v670 = vpop.f32.mrf.mxu0
          %671 = vdwg.mxu0
          %v672 = vmax.f32 %v667, 0.0
          %v673 = vld [vmem:[%s4] sm:$0xff]
          %v674 = vmul.f32 %v672, %v673
          %v675 = vpack.c.bf16 %v674, %v674
          %vm676 = vcmask 404480
          %677 = vst.msk [vmem:[%s240] sm:$0xf] %vm676, %v675
        $region48: #{tpu_custom_call.1} parent=39 // pred_fallthru
          _
        %s678 = sand.u32 %s151, 1
        %s679 = scalar_lea.sflag [#allocation4], %s678
        %s680 = sand.u32 %s151, 1
        %s681 = smul.addr %s680, 4
        %s682 = scalar_lea.vmem [#allocation3], %s681
        // Predicated region
        $region49: #{tpu_custom_call.1} parent=39 // pred_check
          %p683 = pneg %p161
        $region50: #{tpu_custom_call.1} parent=39 // pred_check_branch
          %685 = sbr.rel (%p683) target = $region52
        $region51: #{tpu_custom_call.1} parent=39 // pred_region
          %s687 = ssub.s32 64, 64
          %688 = vsyncadd %s679, %s687
          %s689 = smul.addr %s23, 64
          %s690 = scalar_lea.hbm %s5, %s689
          %s692 = sshll.u32 %s682, 4
          %s693 = int_to_ptr.vmem [resolvable:$true] %s692
          %695 = dma.vmem_to_hbm [thread:$0]  %s693, 64, %s690, %s679
        $region52: #{tpu_custom_call.1} parent=39 // pred_fallthru
          _
      $region40: #{tpu_custom_call.1} parent=5 // pred_fallthru
        _
      %p696 = scmp.le.s32.totalorder 2, %s14
      // Predicated region
      $region53: #{tpu_custom_call.1} parent=5 // pred_check
        %p697 = pneg %p696
      $region54: #{tpu_custom_call.1} parent=5 // pred_check_branch
        %699 = sbr.rel (%p697) target = $region56
      $region55: #{tpu_custom_call.1} parent=5 // pred_region
        %s700 = ssub.s32 %s14, 2
        // Predicated region
        $region57: #{tpu_custom_call.1} parent=55 // pred_check
          %p701 = pneg %p167
        $region58: #{tpu_custom_call.1} parent=55 // pred_check_branch
          %703 = sbr.rel (%p701) target = $region60
        $region59: #{tpu_custom_call.1} parent=55 // pred_region
          %s704 = sand.u32 %s152, 1
          %s705 = scalar_lea.sflag [#allocation4], %s704
          %s706 = sand.u32 %s152, 1
          %s707 = smul.addr %s706, 4
          %s708 = scalar_lea.vmem [#allocation3], %s707
          %709 = dma.done %s705, 64
        $region60: #{tpu_custom_call.1} parent=55 // pred_fallthru
          _
      $region56: #{tpu_custom_call.1} parent=5 // pred_fallthru
        _
    $region6: #{tpu_custom_call.1} parent=1 // loop_footer
      %s18 = sadd.s32 1, %s14
    $region7: #{tpu_custom_call.1} parent=1 // loop_footer_branch
      %13 = sbr.rel target = $region3
    $region8: #{tpu_custom_call.1} parent=1 // loop_exit
      _
    %710 = vsyncpa [#allocation4], 1
    %s711 = scalar_lea.sflag [#allocation4], 1
    %712 = vsyncpa %s711, 1

</llo_original>
